<compile_context>
chip_gen: v6e
topology: v6e:2x2x1
jax: 0.10.0
libtpu: 0.0.40
codegen_flags: <defaults>
</compile_context>

<pallas_src>
import numpy as np

import jax
import jax.numpy as jnp
from jax import lax
from jax.experimental import pallas as pl
from jax.experimental.pallas import tpu as pltpu


# --------------------------- static helpers ---------------------------------
def _tap_masks(H, W, block_batch):
    """(9, 1, block_batch*HW) f32 masks: 1 where the 3x3 tap's source pixel is
    in-bounds, 0 where zero padding applies.  Tiled per image so rolls that
    bleed across concatenated images are zeroed correctly."""
    HW = H * W
    ii, jj = np.divmod(np.arange(HW), W)
    m = np.zeros((9, HW), np.float32)
    for t in range(9):
        oy, ox = t // 3 - 1, t % 3 - 1
        m[t] = ((ii + oy >= 0) & (ii + oy < H) &
                (jj + ox >= 0) & (jj + ox < W)).astype(np.float32)
    m = np.tile(m, (1, block_batch))
    return jnp.asarray(m.reshape(9, 1, block_batch * HW))


# ------------------------------ wrapper --------------------------------------
def med_convblock_forward(params, x, *, block_batch=None):
    """x: (N, C, H, W) float32 in PyTorch NCHW layout."""
    N, C, H, W = x.shape
    HW = H * W
    med = params["w1"].shape[0]

    if block_batch is None:
        # Fatter lane tiles amortize MXU weight pushes and per-grid-step
        # overhead, but keep >= 2 grid steps so both v7x TensorCores get work.
        block_batch = 1
        for b in (4, 3, 2):
            if N % b == 0 and N // b >= 2:
                block_batch = b
                break
    assert N % block_batch == 0, (N, block_batch)
    T = N // block_batch
    L = block_batch * HW

    # Static per-tap lane-roll amounts: out[d] = h1[(d + oy*W + ox) mod L],
    # i.e. jnp.roll / pltpu.roll with shift = (-(oy*W + ox)) mod L.
    tap_shifts = [(-(t // 3 - 1) * W - (t % 3 - 1)) % L for t in range(9)]
    masks = _tap_masks(H, W, block_batch)            # (9, 1, L) f32

    def kernel(x_ref, w1_ref, b1_ref, w2_ref, b2_ref, w3_ref, b3_ref,
               m_ref, o_ref):
        # conv1 (1x1, BN1 scale pre-folded into w1) + bias + ReLU.
        xb = x_ref[0].astype(jnp.bfloat16)                         # (C, L)
        h1 = jnp.dot(w1_ref[...], xb, preferred_element_type=jnp.float32)
        h1 = jnp.maximum(h1 + b1_ref[...], 0.0)                    # (med, L) f32

        # conv2 (3x3, pad=1): each tap = XLU lane-roll + VPU border mask; stack
        # the 9 shifted copies on sublanes and contract in ONE K=9*med MXU pass.
        taps = []
        for t, s in enumerate(tap_shifts):
            r = h1 if s == 0 else pltpu.roll(h1, shift=s, axis=1)
            if t != 4:                       # center tap needs no mask
                r = r * m_ref[t]
            taps.append(r.astype(jnp.bfloat16))
        stacked = jnp.concatenate(taps, axis=0)                    # (9*med, L)
        h2 = jnp.dot(w2_ref[...], stacked, preferred_element_type=jnp.float32)
        h2b = jnp.maximum(h2 + b2_ref[...], 0.0).astype(jnp.bfloat16)

        # conv3 (1x1) + bias + residual add + ReLU.  The f32 residual is
        # re-read here to keep its live range short.
        y = jnp.dot(w3_ref[...], h2b, preferred_element_type=jnp.float32)
        y = y + b3_ref[...] + x_ref[0]
        o_ref[0] = jnp.maximum(y, 0.0)

    # Channels-first, lane-dense layout: (T, C, block_batch*HW).
    x_t = (x.astype(jnp.float32)
            .reshape(T, block_batch, C, HW)
            .transpose(0, 2, 1, 3)
            .reshape(T, C, L))

    out = pl.pallas_call(
        kernel,
        out_shape=jax.ShapeDtypeStruct((T, C, L), jnp.float32),
        grid=(T,),
        in_specs=[
            pl.BlockSpec((1, C, L), lambda n: (n, 0, 0)),       # x / residual
            pl.BlockSpec((med, C), lambda n: (0, 0)),           # w1 (bf16, BN folded)
            pl.BlockSpec((med, 1), lambda n: (0, 0)),           # b1
            pl.BlockSpec((med, 9 * med), lambda n: (0, 0)),     # w2 fused taps (bf16)
            pl.BlockSpec((med, 1), lambda n: (0, 0)),           # b2
            pl.BlockSpec((C, med), lambda n: (0, 0)),           # w3 (bf16, BN folded)
            pl.BlockSpec((C, 1), lambda n: (0, 0)),             # b3
            pl.BlockSpec((9, 1, L), lambda n: (0, 0, 0)),       # border masks
        ],
        out_specs=pl.BlockSpec((1, C, L), lambda n: (n, 0, 0)),
        compiler_params=pltpu.CompilerParams(
            dimension_semantics=("parallel",),   # v7x: shard batch-tiles over 2 TCs
        ),
    )(x_t, params["w1"], params["b1"], params["w2"], params["b2"],
      params["w3"], params["b3"], masks)

    return (out.reshape(T, C, block_batch, HW)
               .transpose(0, 2, 1, 3)
               .reshape(N, C, H, W))


# --------------------------- parameter building ------------------------------
def fold_bn(gamma, beta, mean, var, eps):
    s = gamma / jnp.sqrt(var + eps)
    return s, beta - s * mean


def build_params(key, inplanes, eps=1e-6):
    """Returns (kernel_params [bf16 weights with BN scales folded in, f32
    biases], ref_params [f32])."""
    med = inplanes // 4
    keys = jax.random.split(key, 6)

    def normal(k, shape, std):
        return (std * jax.random.normal(k, shape)).astype(jnp.float32)

    # PyTorch-layout (OIHW) f32 master weights; conv bias=False as in the module.
    w1_4d = normal(keys[0], (med, inplanes, 1, 1), 1.0 / np.sqrt(inplanes))
    w2_4d = normal(keys[1], (med, med, 3, 3), 1.0 / np.sqrt(med * 9))
    w3_4d = normal(keys[2], (inplanes, med, 1, 1), 1.0 / np.sqrt(med))

    def bn_params(k, c):
        k1, k2, k3, k4 = jax.random.split(k, 4)
        gamma = (1.0 + 0.1 * jax.random.normal(k1, (c,))).astype(jnp.float32)
        beta = (0.1 * jax.random.normal(k2, (c,))).astype(jnp.float32)
        mean = (0.1 * jax.random.normal(k3, (c,))).astype(jnp.float32)
        var = (1.0 + 0.2 * jax.random.uniform(k4, (c,))).astype(jnp.float32)
        return gamma, beta, mean, var

    s1, b1 = fold_bn(*bn_params(keys[3], med), eps)
    s2, b2 = fold_bn(*bn_params(keys[4], med), eps)
    s3, b3 = fold_bn(*bn_params(keys[5], inplanes), eps)

    # Fold BN scales into weights offline (f32), then cast to bf16 once.
    w1_f = (w1_4d[:, :, 0, 0] * s1[:, None]).astype(jnp.bfloat16)        # (med, C)
    # w2 columns ordered as tap-major (t = ky*3 + kx), channel-minor, matching
    # the kernel's sublane-stacked (9*med, L) activation tile.
    w2_f = (jnp.transpose(w2_4d * s2[:, None, None, None], (0, 2, 3, 1))
              .reshape(med, 9 * med)).astype(jnp.bfloat16)               # (med, 9*med)
    w3_f = (w3_4d[:, :, 0, 0] * s3[:, None]).astype(jnp.bfloat16)        # (C, med)

    kernel_params = dict(
        w1=w1_f, b1=b1.reshape(med, 1),
        w2=w2_f, b2=b2.reshape(med, 1),
        w3=w3_f, b3=b3.reshape(inplanes, 1),
    )
    ref_params = dict(w1=w1_4d, w2=w2_4d, w3=w3_4d,
                      s1=s1, b1=b1, s2=s2, b2=b2, s3=s3, b3=b3)
    return kernel_params, ref_params


# ----------------------- pure-XLA reference (f32) ----------------------------
def reference_forward(p, x):
    def conv(h, w, pad):
        return lax.conv_general_dilated(
            h, w, window_strides=(1, 1), padding=[(pad, pad), (pad, pad)],
            dimension_numbers=("NCHW", "OIHW", "NCHW"))

    def bn(h, s, b):
        return h * s[None, :, None, None] + b[None, :, None, None]

    residual = x
    h = jax.nn.relu(bn(conv(x, p["w1"], 0), p["s1"], p["b1"]))
    h = jax.nn.relu(bn(conv(h, p["w2"], 1), p["s2"], p["b2"]))
    h = bn(conv(h, p["w3"], 0), p["s3"], p["b3"])
    return jax.nn.relu(h + residual)


# ------------------------------------ main -----------------------------------
if __name__ == "__main__":
    key = jax.random.PRNGKey(0)
    k_param, k_x = jax.random.split(key)

    N, C, H, W = 2, 64, 16, 16          # inplanes=64 -> med_planes=16
    kernel_params, ref_params = build_params(k_param, C)
    x = jax.random.normal(k_x, (N, C, H, W), jnp.float32)

    fwd = jax.jit(med_convblock_forward)
    out = jax.block_until_ready(fwd(kernel_params, x))

    assert out.shape == (N, C, H, W), out.shape
    assert bool(jnp.all(jnp.isfinite(out)))

    ref = reference_forward(ref_params, x)
    max_err = float(jnp.max(jnp.abs(out - ref)))
    assert max_err < 1e-1, f"max abs error vs XLA reference: {max_err}"

    print("KERNEL_OK")
</pallas_src>

<mosaic_0001>
module attributes {stable_mosaic.version = 11 : i64} {
  func.func @kernel(%arg0: i32, %arg1: memref<1x64x256xf32, #tpu.memory_space<vmem>>, %arg2: memref<16x64xbf16, #tpu.memory_space<vmem>>, %arg3: memref<16x1xf32, #tpu.memory_space<vmem>>, %arg4: memref<16x144xbf16, #tpu.memory_space<vmem>>, %arg5: memref<16x1xf32, #tpu.memory_space<vmem>>, %arg6: memref<64x16xbf16, #tpu.memory_space<vmem>>, %arg7: memref<64x1xf32, #tpu.memory_space<vmem>>, %arg8: memref<9x1x256xf32, #tpu.memory_space<vmem>>, %arg9: memref<1x64x256xf32, #tpu.memory_space<vmem>>) attributes {dimension_semantics = [#tpu.dimension_semantics<parallel>], iteration_bounds = array<i64: 2>, scalar_prefetch = 0 : i64, scratch_operands = 0 : i64, tpu.core_type = #tpu.core_type<tc>, window_params = [{transform_indices = @transform_0, window_bounds = array<i64: 1, 64, 256>}, {pipeline_mode = #tpu.pipeline_mode<synchronous>, transform_indices = @transform_1, window_bounds = array<i64: 16, 64>}, {pipeline_mode = #tpu.pipeline_mode<synchronous>, transform_indices = @transform_2, window_bounds = array<i64: 16, 1>}, {pipeline_mode = #tpu.pipeline_mode<synchronous>, transform_indices = @transform_3, window_bounds = array<i64: 16, 144>}, {pipeline_mode = #tpu.pipeline_mode<synchronous>, transform_indices = @transform_4, window_bounds = array<i64: 16, 1>}, {pipeline_mode = #tpu.pipeline_mode<synchronous>, transform_indices = @transform_5, window_bounds = array<i64: 64, 16>}, {pipeline_mode = #tpu.pipeline_mode<synchronous>, transform_indices = @transform_6, window_bounds = array<i64: 64, 1>}, {pipeline_mode = #tpu.pipeline_mode<synchronous>, transform_indices = @transform_7, window_bounds = array<i64: 9, 1, 256>}, {transform_indices = @transform_8, window_bounds = array<i64: 1, 64, 256>}]} {
    %c0 = arith.constant 0 : index
    %c0_0 = arith.constant 0 : index
    %c0_1 = arith.constant 0 : index
    %0 = vector.load %arg1[%c0, %c0_0, %c0_1] : memref<1x64x256xf32, #tpu.memory_space<vmem>>, vector<1x64x256xf32>
    %1 = vector.shape_cast %0 : vector<1x64x256xf32> to vector<64x256xf32>
    %2 = arith.truncf %1 : vector<64x256xf32> to vector<64x256xbf16>
    %c0_2 = arith.constant 0 : index
    %c0_3 = arith.constant 0 : index
    %3 = vector.load %arg2[%c0_2, %c0_3] : memref<16x64xbf16, #tpu.memory_space<vmem>>, vector<16x64xbf16>
    %cst = arith.constant dense<0.000000e+00> : vector<16x256xf32>
    %4 = tpu.matmul %3, %2, %cst {dimension_numbers = #tpu.dot_dimension_numbers<[1], [0], [0], [1], [0, 0, 1, 1], [], []>} : vector<16x64xbf16>, vector<64x256xbf16>, vector<16x256xf32> -> vector<16x256xf32>
    %c0_4 = arith.constant 0 : index
    %c0_5 = arith.constant 0 : index
    %5 = vector.load %arg3[%c0_4, %c0_5] : memref<16x1xf32, #tpu.memory_space<vmem>>, vector<16x1xf32>
    %6 = vector.broadcast %5 : vector<16x1xf32> to vector<16x256xf32>
    %7 = arith.addf %4, %6 : vector<16x256xf32>
    %cst_6 = arith.constant 0.000000e+00 : f32
    %8 = vector.broadcast %cst_6 : f32 to vector<16x256xf32>
    %9 = arith.maximumf %7, %8 : vector<16x256xf32>
    %c17_i32 = arith.constant 17 : i32
    %10 = tpu.dynamic_rotate %9 by %c17_i32 dim 1 : vector<16x256xf32>, i32 -> vector<16x256xf32>
    %c0_7 = arith.constant 0 : index
    %c0_8 = arith.constant 0 : index
    %c0_9 = arith.constant 0 : index
    %11 = vector.load %arg8[%c0_7, %c0_8, %c0_9] : memref<9x1x256xf32, #tpu.memory_space<vmem>>, vector<1x1x256xf32>
    %12 = vector.shape_cast %11 : vector<1x1x256xf32> to vector<1x256xf32>
    %13 = vector.broadcast %12 : vector<1x256xf32> to vector<16x256xf32>
    %14 = arith.mulf %10, %13 : vector<16x256xf32>
    %15 = arith.truncf %14 : vector<16x256xf32> to vector<16x256xbf16>
    %c16_i32 = arith.constant 16 : i32
    %16 = tpu.dynamic_rotate %9 by %c16_i32 dim 1 : vector<16x256xf32>, i32 -> vector<16x256xf32>
    %c1 = arith.constant 1 : index
    %c0_10 = arith.constant 0 : index
    %c0_11 = arith.constant 0 : index
    %17 = vector.load %arg8[%c1, %c0_10, %c0_11] : memref<9x1x256xf32, #tpu.memory_space<vmem>>, vector<1x1x256xf32>
    %18 = vector.shape_cast %17 : vector<1x1x256xf32> to vector<1x256xf32>
    %19 = vector.broadcast %18 : vector<1x256xf32> to vector<16x256xf32>
    %20 = arith.mulf %16, %19 : vector<16x256xf32>
    %21 = arith.truncf %20 : vector<16x256xf32> to vector<16x256xbf16>
    %c15_i32 = arith.constant 15 : i32
    %22 = tpu.dynamic_rotate %9 by %c15_i32 dim 1 : vector<16x256xf32>, i32 -> vector<16x256xf32>
    %c2 = arith.constant 2 : index
    %c0_12 = arith.constant 0 : index
    %c0_13 = arith.constant 0 : index
    %23 = vector.load %arg8[%c2, %c0_12, %c0_13] : memref<9x1x256xf32, #tpu.memory_space<vmem>>, vector<1x1x256xf32>
    %24 = vector.shape_cast %23 : vector<1x1x256xf32> to vector<1x256xf32>
    %25 = vector.broadcast %24 : vector<1x256xf32> to vector<16x256xf32>
    %26 = arith.mulf %22, %25 : vector<16x256xf32>
    %27 = arith.truncf %26 : vector<16x256xf32> to vector<16x256xbf16>
    %c1_i32 = arith.constant 1 : i32
    %28 = tpu.dynamic_rotate %9 by %c1_i32 dim 1 : vector<16x256xf32>, i32 -> vector<16x256xf32>
    %c3 = arith.constant 3 : index
    %c0_14 = arith.constant 0 : index
    %c0_15 = arith.constant 0 : index
    %29 = vector.load %arg8[%c3, %c0_14, %c0_15] : memref<9x1x256xf32, #tpu.memory_space<vmem>>, vector<1x1x256xf32>
    %30 = vector.shape_cast %29 : vector<1x1x256xf32> to vector<1x256xf32>
    %31 = vector.broadcast %30 : vector<1x256xf32> to vector<16x256xf32>
    %32 = arith.mulf %28, %31 : vector<16x256xf32>
    %33 = arith.truncf %32 : vector<16x256xf32> to vector<16x256xbf16>
    %34 = arith.truncf %9 : vector<16x256xf32> to vector<16x256xbf16>
    %c255_i32 = arith.constant 255 : i32
    %35 = tpu.dynamic_rotate %9 by %c255_i32 dim 1 : vector<16x256xf32>, i32 -> vector<16x256xf32>
    %c5 = arith.constant 5 : index
    %c0_16 = arith.constant 0 : index
    %c0_17 = arith.constant 0 : index
    %36 = vector.load %arg8[%c5, %c0_16, %c0_17] : memref<9x1x256xf32, #tpu.memory_space<vmem>>, vector<1x1x256xf32>
    %37 = vector.shape_cast %36 : vector<1x1x256xf32> to vector<1x256xf32>
    %38 = vector.broadcast %37 : vector<1x256xf32> to vector<16x256xf32>
    %39 = arith.mulf %35, %38 : vector<16x256xf32>
    %40 = arith.truncf %39 : vector<16x256xf32> to vector<16x256xbf16>
    %c241_i32 = arith.constant 241 : i32
    %41 = tpu.dynamic_rotate %9 by %c241_i32 dim 1 : vector<16x256xf32>, i32 -> vector<16x256xf32>
    %c6 = arith.constant 6 : index
    %c0_18 = arith.constant 0 : index
    %c0_19 = arith.constant 0 : index
    %42 = vector.load %arg8[%c6, %c0_18, %c0_19] : memref<9x1x256xf32, #tpu.memory_space<vmem>>, vector<1x1x256xf32>
    %43 = vector.shape_cast %42 : vector<1x1x256xf32> to vector<1x256xf32>
    %44 = vector.broadcast %43 : vector<1x256xf32> to vector<16x256xf32>
    %45 = arith.mulf %41, %44 : vector<16x256xf32>
    %46 = arith.truncf %45 : vector<16x256xf32> to vector<16x256xbf16>
    %c240_i32 = arith.constant 240 : i32
    %47 = tpu.dynamic_rotate %9 by %c240_i32 dim 1 : vector<16x256xf32>, i32 -> vector<16x256xf32>
    %c7 = arith.constant 7 : index
    %c0_20 = arith.constant 0 : index
    %c0_21 = arith.constant 0 : index
    %48 = vector.load %arg8[%c7, %c0_20, %c0_21] : memref<9x1x256xf32, #tpu.memory_space<vmem>>, vector<1x1x256xf32>
    %49 = vector.shape_cast %48 : vector<1x1x256xf32> to vector<1x256xf32>
    %50 = vector.broadcast %49 : vector<1x256xf32> to vector<16x256xf32>
    %51 = arith.mulf %47, %50 : vector<16x256xf32>
    %52 = arith.truncf %51 : vector<16x256xf32> to vector<16x256xbf16>
    %c239_i32 = arith.constant 239 : i32
    %53 = tpu.dynamic_rotate %9 by %c239_i32 dim 1 : vector<16x256xf32>, i32 -> vector<16x256xf32>
    %c8 = arith.constant 8 : index
    %c0_22 = arith.constant 0 : index
    %c0_23 = arith.constant 0 : index
    %54 = vector.load %arg8[%c8, %c0_22, %c0_23] : memref<9x1x256xf32, #tpu.memory_space<vmem>>, vector<1x1x256xf32>
    %55 = vector.shape_cast %54 : vector<1x1x256xf32> to vector<1x256xf32>
    %56 = vector.broadcast %55 : vector<1x256xf32> to vector<16x256xf32>
    %57 = arith.mulf %53, %56 : vector<16x256xf32>
    %58 = arith.truncf %57 : vector<16x256xf32> to vector<16x256xbf16>
    %59 = tpu.concatenate %15, %21, %27, %33, %34, %40, %46, %52, %58 in 0 : vector<16x256xbf16>, vector<16x256xbf16>, vector<16x256xbf16>, vector<16x256xbf16>, vector<16x256xbf16>, vector<16x256xbf16>, vector<16x256xbf16>, vector<16x256xbf16>, vector<16x256xbf16> -> vector<144x256xbf16>
    %c0_24 = arith.constant 0 : index
    %c0_25 = arith.constant 0 : index
    %60 = vector.load %arg4[%c0_24, %c0_25] : memref<16x144xbf16, #tpu.memory_space<vmem>>, vector<16x144xbf16>
    %cst_26 = arith.constant dense<0.000000e+00> : vector<16x256xf32>
    %61 = tpu.matmul %60, %59, %cst_26 {dimension_numbers = #tpu.dot_dimension_numbers<[1], [0], [0], [1], [0, 0, 1, 1], [], []>} : vector<16x144xbf16>, vector<144x256xbf16>, vector<16x256xf32> -> vector<16x256xf32>
    %c0_27 = arith.constant 0 : index
    %c0_28 = arith.constant 0 : index
    %62 = vector.load %arg5[%c0_27, %c0_28] : memref<16x1xf32, #tpu.memory_space<vmem>>, vector<16x1xf32>
    %63 = vector.broadcast %62 : vector<16x1xf32> to vector<16x256xf32>
    %64 = arith.addf %61, %63 : vector<16x256xf32>
    %cst_29 = arith.constant 0.000000e+00 : f32
    %65 = vector.broadcast %cst_29 : f32 to vector<16x256xf32>
    %66 = arith.maximumf %64, %65 : vector<16x256xf32>
    %67 = arith.truncf %66 : vector<16x256xf32> to vector<16x256xbf16>
    %c0_30 = arith.constant 0 : index
    %c0_31 = arith.constant 0 : index
    %68 = vector.load %arg6[%c0_30, %c0_31] : memref<64x16xbf16, #tpu.memory_space<vmem>>, vector<64x16xbf16>
    %cst_32 = arith.constant dense<0.000000e+00> : vector<64x256xf32>
    %69 = tpu.matmul %68, %67, %cst_32 {dimension_numbers = #tpu.dot_dimension_numbers<[1], [0], [0], [1], [0, 0, 1, 1], [], []>} : vector<64x16xbf16>, vector<16x256xbf16>, vector<64x256xf32> -> vector<64x256xf32>
    %c0_33 = arith.constant 0 : index
    %c0_34 = arith.constant 0 : index
    %70 = vector.load %arg7[%c0_33, %c0_34] : memref<64x1xf32, #tpu.memory_space<vmem>>, vector<64x1xf32>
    %71 = vector.broadcast %70 : vector<64x1xf32> to vector<64x256xf32>
    %72 = arith.addf %69, %71 : vector<64x256xf32>
    %c0_35 = arith.constant 0 : index
    %c0_36 = arith.constant 0 : index
    %c0_37 = arith.constant 0 : index
    %73 = vector.load %arg1[%c0_35, %c0_36, %c0_37] : memref<1x64x256xf32, #tpu.memory_space<vmem>>, vector<1x64x256xf32>
    %74 = vector.shape_cast %73 : vector<1x64x256xf32> to vector<64x256xf32>
    %75 = arith.addf %72, %74 : vector<64x256xf32>
    %cst_38 = arith.constant 0.000000e+00 : f32
    %76 = vector.broadcast %cst_38 : f32 to vector<64x256xf32>
    %77 = arith.maximumf %75, %76 : vector<64x256xf32>
    %c0_39 = arith.constant 0 : index
    %c0_40 = arith.constant 0 : index
    %c0_41 = arith.constant 0 : index
    %78 = vector.load %arg9[%c0_39, %c0_40, %c0_41] : memref<1x64x256xf32, #tpu.memory_space<vmem>>, vector<1x64x256xf32>
    %79 = vector.shape_cast %78 : vector<1x64x256xf32> to vector<64x256xf32>
    %80 = vector.shape_cast %77 : vector<64x256xf32> to vector<1x64x256xf32>
    tpu.vector_store %arg9[%c0_39, %c0_40, %c0_41], %80 {strides = array<i32>} : memref<1x64x256xf32, #tpu.memory_space<vmem>>, vector<1x64x256xf32>,
    return
  }
  func.func @transform_0(%arg0: i32) -> (i32, i32, i32) {
    %c0_i32 = arith.constant 0 : i32
    %c0_i32_0 = arith.constant 0 : i32
    %c0_i32_1 = arith.constant 0 : i32
    return %arg0, %c0_i32, %c0_i32_0 : i32, i32, i32
  }
  func.func @transform_1(%arg0: i32) -> (i32, i32) {
    %c0_i32 = arith.constant 0 : i32
    %c0_i32_0 = arith.constant 0 : i32
    %c0_i32_1 = arith.constant 0 : i32
    return %c0_i32, %c0_i32_0 : i32, i32
  }
  func.func @transform_2(%arg0: i32) -> (i32, i32) {
    %c0_i32 = arith.constant 0 : i32
    %c0_i32_0 = arith.constant 0 : i32
    %c0_i32_1 = arith.constant 0 : i32
    return %c0_i32, %c0_i32_0 : i32, i32
  }
  func.func @transform_3(%arg0: i32) -> (i32, i32) {
    %c0_i32 = arith.constant 0 : i32
    %c0_i32_0 = arith.constant 0 : i32
    %c0_i32_1 = arith.constant 0 : i32
    return %c0_i32, %c0_i32_0 : i32, i32
  }
  func.func @transform_4(%arg0: i32) -> (i32, i32) {
    %c0_i32 = arith.constant 0 : i32
    %c0_i32_0 = arith.constant 0 : i32
    %c0_i32_1 = arith.constant 0 : i32
    return %c0_i32, %c0_i32_0 : i32, i32
  }
  func.func @transform_5(%arg0: i32) -> (i32, i32) {
    %c0_i32 = arith.constant 0 : i32
    %c0_i32_0 = arith.constant 0 : i32
    %c0_i32_1 = arith.constant 0 : i32
    return %c0_i32, %c0_i32_0 : i32, i32
  }
  func.func @transform_6(%arg0: i32) -> (i32, i32) {
    %c0_i32 = arith.constant 0 : i32
    %c0_i32_0 = arith.constant 0 : i32
    %c0_i32_1 = arith.constant 0 : i32
    return %c0_i32, %c0_i32_0 : i32, i32
  }
  func.func @transform_7(%arg0: i32) -> (i32, i32, i32) {
    %c0_i32 = arith.constant 0 : i32
    %c0_i32_0 = arith.constant 0 : i32
    %c0_i32_1 = arith.constant 0 : i32
    %c0_i32_2 = arith.constant 0 : i32
    return %c0_i32, %c0_i32_0, %c0_i32_1 : i32, i32, i32
  }
  func.func @transform_8(%arg0: i32) -> (i32, i32, i32) {
    %c0_i32 = arith.constant 0 : i32
    %c0_i32_0 = arith.constant 0 : i32
    %c0_i32_1 = arith.constant 0 : i32
    return %arg0, %c0_i32, %c0_i32_0 : i32, i32, i32
  }
}

</mosaic_0001>

<llo_original>
// kernel: med_convblock_forward.1
$region0: #{med_convblock_forward.1}
  #allocation0 [shape = 'u32[]', space=smem, size = 0x4, offset = 0x4, fixed_abs, tag = 'smem constant byte address 0x4 - core index']
  #allocation1 [shape = 'u32[144,128]{1,0:T(1,128)}', space=vmem, size = 0x12000, scoped, tag = 'internal scratch']
  %s0 = inlined_call_operand.vmem [shape: f32[2,64,256], index: 0, kind: input, shape index: {}]
  %s1 = inlined_call_operand.vmem [shape: bf16[16,64], index: 1, kind: input, shape index: {}]
  %s2 = inlined_call_operand.vmem [shape: f32[16,1], index: 2, kind: input, shape index: {}]
  %s3 = inlined_call_operand.vmem [shape: bf16[16,144], index: 3, kind: input, shape index: {}]
  %s4 = inlined_call_operand.vmem [shape: f32[16,1], index: 4, kind: input, shape index: {}]
  %s5 = inlined_call_operand.vmem [shape: bf16[64,16], index: 5, kind: input, shape index: {}]
  %s6 = inlined_call_operand.vmem [shape: f32[64,1], index: 6, kind: input, shape index: {}]
  %s7 = inlined_call_operand.vmem [shape: f32[9,1,256], index: 7, kind: input, shape index: {}]
  %s8 = inlined_call_operand.vmem [shape: f32[2,64,256], index: 8, kind: output, shape index: {}]
  %s9 = sld [smem:[#allocation0]]
  $region65: #{med_convblock_forward.1} parent=0
    _
  %s11 = ssub.s32 1, %s9
  %s12 = scalar_select 0, %s11, %s9
  loop: start=0, step=1, limit=4
  $region2: #{med_convblock_forward.1} parent=0 // loop_pre_header
    _
  $region3: #{med_convblock_forward.1} parent=0 // loop_header
    %s14 = sphi 0, %s18
    %p15 = scmp.ge.s32.totalorder %s14, 4
    %s24 = sphi 0, %s26
    %s27 = sphi 0, %s24
    %s28 = sphi 0, %s27
    %s44 = sphi 0, %s28
    %s48 = sphi 0, %s48
    %s50 = sphi 0, %s48
    %s51 = sphi 0, %s50
    %s65 = sphi 0, %s51
    %s69 = sphi 0, %s69
    %s71 = sphi 0, %s69
    %s72 = sphi 0, %s71
    %s86 = sphi 0, %s72
    %s90 = sphi 0, %s90
    %s92 = sphi 0, %s90
    %s93 = sphi 0, %s92
    %s107 = sphi 0, %s93
    %s111 = sphi 0, %s111
    %s113 = sphi 0, %s111
    %s114 = sphi 0, %s113
    %s128 = sphi 0, %s114
    %s132 = sphi 0, %s132
    %s134 = sphi 0, %s132
    %s135 = sphi 0, %s134
    %s149 = sphi 0, %s135
    %s153 = sphi 0, %s153
    %s155 = sphi 0, %s153
    %s156 = sphi 0, %s155
    %s170 = sphi 0, %s156
    %s174 = sphi 0, %s174
    %s176 = sphi 0, %s174
    %s177 = sphi 0, %s176
    %s191 = sphi 0, %s177
    %s197 = sphi 0, %s199
    %s200 = sphi 0, %s197
    %s201 = sphi 0, %s200
    %s217 = sphi 0, %s201
  $region4: #{med_convblock_forward.1} parent=0 // loop_header_branch
    %17 = sbr.rel (%p15) target = $region8
  $region5: #{med_convblock_forward.1} parent=0 // loop_body
    %s19 = ssub.s32 %s14, 1
    %s20 = ssub.s32 %s14, 2
    %s21 = sadd.s32 %s14, 1
    %s22 = ssub.s32 %s14, %s21
    %p23 = scmp.eq.s32.totalorder %s22, 0
    %s25 = sadd.s32 %s24, 1
    %s26 = scalar_select %p23, %s24, %s25
    %p29 = pneg %p23
    %p30 = scmp.eq.s32.totalorder %s14, 1
    %p31 = por %p29, %p30
    %p32 = scmp.ne.s32.totalorder %s24, %s27
    %p33 = scmp.eq.s32.totalorder %s14, 0
    %p34 = por %p32, %p33
    %p35 = scmp.ne.s32.totalorder %s24, %s27
    %p36 = scmp.eq.s32.totalorder %s19, 1
    %p37 = por %p35, %p36
    %p38 = scmp.ne.s32.totalorder %s27, %s28
    %p39 = scmp.eq.s32.totalorder %s19, 0
    %p40 = por %p38, %p39
    %p41 = scmp.ne.s32.totalorder %s27, %s28
    %p42 = scmp.eq.s32.totalorder %s20, 1
    %p43 = por %p41, %p42
    %p45 = scmp.ne.s32.totalorder %s28, %s44
    %p46 = scmp.eq.s32.totalorder %s20, 0
    %p47 = por %p45, %p46
    %s49 = sadd.s32 %s48, 1
    %p52 = scmp.eq.s32.totalorder %s14, 1
    %p53 = scmp.ne.s32.totalorder %s48, %s50
    %p54 = scmp.eq.s32.totalorder %s14, 0
    %p55 = por %p53, %p54
    %p56 = scmp.ne.s32.totalorder %s48, %s50
    %p57 = scmp.eq.s32.totalorder %s19, 1
    %p58 = por %p56, %p57
    %p59 = scmp.ne.s32.totalorder %s50, %s51
    %p60 = scmp.eq.s32.totalorder %s19, 0
    %p61 = por %p59, %p60
    %p62 = scmp.ne.s32.totalorder %s50, %s51
    %p63 = scmp.eq.s32.totalorder %s20, 1
    %p64 = por %p62, %p63
    %p66 = scmp.ne.s32.totalorder %s51, %s65
    %p67 = scmp.eq.s32.totalorder %s20, 0
    %p68 = por %p66, %p67
    %s70 = sadd.s32 %s69, 1
    %p73 = scmp.eq.s32.totalorder %s14, 1
    %p74 = scmp.ne.s32.totalorder %s69, %s71
    %p75 = scmp.eq.s32.totalorder %s14, 0
    %p76 = por %p74, %p75
    %p77 = scmp.ne.s32.totalorder %s69, %s71
    %p78 = scmp.eq.s32.totalorder %s19, 1
    %p79 = por %p77, %p78
    %p80 = scmp.ne.s32.totalorder %s71, %s72
    %p81 = scmp.eq.s32.totalorder %s19, 0
    %p82 = por %p80, %p81
    %p83 = scmp.ne.s32.totalorder %s71, %s72
    %p84 = scmp.eq.s32.totalorder %s20, 1
    %p85 = por %p83, %p84
    %p87 = scmp.ne.s32.totalorder %s72, %s86
    %p88 = scmp.eq.s32.totalorder %s20, 0
    %p89 = por %p87, %p88
    %s91 = sadd.s32 %s90, 1
    %p94 = scmp.eq.s32.totalorder %s14, 1
    %p95 = scmp.ne.s32.totalorder %s90, %s92
    %p96 = scmp.eq.s32.totalorder %s14, 0
    %p97 = por %p95, %p96
    %p98 = scmp.ne.s32.totalorder %s90, %s92
    %p99 = scmp.eq.s32.totalorder %s19, 1
    %p100 = por %p98, %p99
    %p101 = scmp.ne.s32.totalorder %s92, %s93
    %p102 = scmp.eq.s32.totalorder %s19, 0
    %p103 = por %p101, %p102
    %p104 = scmp.ne.s32.totalorder %s92, %s93
    %p105 = scmp.eq.s32.totalorder %s20, 1
    %p106 = por %p104, %p105
    %p108 = scmp.ne.s32.totalorder %s93, %s107
    %p109 = scmp.eq.s32.totalorder %s20, 0
    %p110 = por %p108, %p109
    %s112 = sadd.s32 %s111, 1
    %p115 = scmp.eq.s32.totalorder %s14, 1
    %p116 = scmp.ne.s32.totalorder %s111, %s113
    %p117 = scmp.eq.s32.totalorder %s14, 0
    %p118 = por %p116, %p117
    %p119 = scmp.ne.s32.totalorder %s111, %s113
    %p120 = scmp.eq.s32.totalorder %s19, 1
    %p121 = por %p119, %p120
    %p122 = scmp.ne.s32.totalorder %s113, %s114
    %p123 = scmp.eq.s32.totalorder %s19, 0
    %p124 = por %p122, %p123
    %p125 = scmp.ne.s32.totalorder %s113, %s114
    %p126 = scmp.eq.s32.totalorder %s20, 1
    %p127 = por %p125, %p126
    %p129 = scmp.ne.s32.totalorder %s114, %s128
    %p130 = scmp.eq.s32.totalorder %s20, 0
    %p131 = por %p129, %p130
    %s133 = sadd.s32 %s132, 1
    %p136 = scmp.eq.s32.totalorder %s14, 1
    %p137 = scmp.ne.s32.totalorder %s132, %s134
    %p138 = scmp.eq.s32.totalorder %s14, 0
    %p139 = por %p137, %p138
    %p140 = scmp.ne.s32.totalorder %s132, %s134
    %p141 = scmp.eq.s32.totalorder %s19, 1
    %p142 = por %p140, %p141
    %p143 = scmp.ne.s32.totalorder %s134, %s135
    %p144 = scmp.eq.s32.totalorder %s19, 0
    %p145 = por %p143, %p144
    %p146 = scmp.ne.s32.totalorder %s134, %s135
    %p147 = scmp.eq.s32.totalorder %s20, 1
    %p148 = por %p146, %p147
    %p150 = scmp.ne.s32.totalorder %s135, %s149
    %p151 = scmp.eq.s32.totalorder %s20, 0
    %p152 = por %p150, %p151
    %s154 = sadd.s32 %s153, 1
    %p157 = scmp.eq.s32.totalorder %s14, 1
    %p158 = scmp.ne.s32.totalorder %s153, %s155
    %p159 = scmp.eq.s32.totalorder %s14, 0
    %p160 = por %p158, %p159
    %p161 = scmp.ne.s32.totalorder %s153, %s155
    %p162 = scmp.eq.s32.totalorder %s19, 1
    %p163 = por %p161, %p162
    %p164 = scmp.ne.s32.totalorder %s155, %s156
    %p165 = scmp.eq.s32.totalorder %s19, 0
    %p166 = por %p164, %p165
    %p167 = scmp.ne.s32.totalorder %s155, %s156
    %p168 = scmp.eq.s32.totalorder %s20, 1
    %p169 = por %p167, %p168
    %p171 = scmp.ne.s32.totalorder %s156, %s170
    %p172 = scmp.eq.s32.totalorder %s20, 0
    %p173 = por %p171, %p172
    %s175 = sadd.s32 %s174, 1
    %p178 = scmp.eq.s32.totalorder %s14, 1
    %p179 = scmp.ne.s32.totalorder %s174, %s176
    %p180 = scmp.eq.s32.totalorder %s14, 0
    %p181 = por %p179, %p180
    %p182 = scmp.ne.s32.totalorder %s174, %s176
    %p183 = scmp.eq.s32.totalorder %s19, 1
    %p184 = por %p182, %p183
    %p185 = scmp.ne.s32.totalorder %s176, %s177
    %p186 = scmp.eq.s32.totalorder %s19, 0
    %p187 = por %p185, %p186
    %p188 = scmp.ne.s32.totalorder %s176, %s177
    %p189 = scmp.eq.s32.totalorder %s20, 1
    %p190 = por %p188, %p189
    %p192 = scmp.ne.s32.totalorder %s177, %s191
    %p193 = scmp.eq.s32.totalorder %s20, 0
    %p194 = por %p192, %p193
    %s195 = ssub.s32 %s14, %s21
    %p196 = scmp.eq.s32.totalorder %s195, 0
    %s198 = sadd.s32 %s197, 1
    %s199 = scalar_select %p196, %s197, %s198
    %p202 = pneg %p196
    %p203 = scmp.eq.s32.totalorder %s14, 1
    %p204 = por %p202, %p203
    %p205 = scmp.ne.s32.totalorder %s197, %s200
    %p206 = scmp.eq.s32.totalorder %s14, 0
    %p207 = por %p205, %p206
    %p208 = scmp.ne.s32.totalorder %s197, %s200
    %p209 = scmp.eq.s32.totalorder %s19, 1
    %p210 = por %p208, %p209
    %p211 = scmp.ne.s32.totalorder %s200, %s201
    %p212 = scmp.eq.s32.totalorder %s19, 0
    %p213 = por %p211, %p212
    %p214 = scmp.ne.s32.totalorder %s200, %s201
    %p215 = scmp.eq.s32.totalorder %s20, 1
    %p216 = por %p214, %p215
    %p218 = scmp.ne.s32.totalorder %s201, %s217
    %p219 = scmp.eq.s32.totalorder %s20, 0
    %p220 = por %p218, %p219
    %p221 = scmp.le.s32.totalorder 1, %s14
    %p222 = scmp.lt.s32.totalorder %s14, 3
    %p223 = pnand %p221, %p222
    %p224 = pneg %p223
    // Predicated region
    $region9: #{med_convblock_forward.1} parent=5 // pred_check
      _
    $region10: #{med_convblock_forward.1} parent=5 // pred_check_branch
      %226 = sbr.rel (%p223) target = $region12
    $region11: #{med_convblock_forward.1} parent=5 // pred_region
      %s227 = ssub.s32 %s14, 1
      // Predicated region
      $region13: #{med_convblock_forward.1} parent=11 // pred_check
        %p228 = pneg %p61
      $region14: #{med_convblock_forward.1} parent=11 // pred_check_branch
        %230 = sbr.rel (%p228) target = $region16
      $region15: #{med_convblock_forward.1} parent=11 // pred_region
        _
      $region16: #{med_convblock_forward.1} parent=11 // pred_fallthru
        _
      // Predicated region
      $region17: #{med_convblock_forward.1} parent=11 // pred_check
        %p231 = pneg %p82
      $region18: #{med_convblock_forward.1} parent=11 // pred_check_branch
        %233 = sbr.rel (%p231) target = $region20
      $region19: #{med_convblock_forward.1} parent=11 // pred_region
        _
      $region20: #{med_convblock_forward.1} parent=11 // pred_fallthru
        _
      // Predicated region
      $region21: #{med_convblock_forward.1} parent=11 // pred_check
        %p234 = pneg %p103
      $region22: #{med_convblock_forward.1} parent=11 // pred_check_branch
        %236 = sbr.rel (%p234) target = $region24
      $region23: #{med_convblock_forward.1} parent=11 // pred_region
        _
      $region24: #{med_convblock_forward.1} parent=11 // pred_fallthru
        _
      // Predicated region
      $region25: #{med_convblock_forward.1} parent=11 // pred_check
        %p237 = pneg %p124
      $region26: #{med_convblock_forward.1} parent=11 // pred_check_branch
        %239 = sbr.rel (%p237) target = $region28
      $region27: #{med_convblock_forward.1} parent=11 // pred_region
        _
      $region28: #{med_convblock_forward.1} parent=11 // pred_fallthru
        _
      // Predicated region
      $region29: #{med_convblock_forward.1} parent=11 // pred_check
        %p240 = pneg %p145
      $region30: #{med_convblock_forward.1} parent=11 // pred_check_branch
        %242 = sbr.rel (%p240) target = $region32
      $region31: #{med_convblock_forward.1} parent=11 // pred_region
        _
      $region32: #{med_convblock_forward.1} parent=11 // pred_fallthru
        _
      // Predicated region
      $region33: #{med_convblock_forward.1} parent=11 // pred_check
        %p243 = pneg %p166
      $region34: #{med_convblock_forward.1} parent=11 // pred_check_branch
        %245 = sbr.rel (%p243) target = $region36
      $region35: #{med_convblock_forward.1} parent=11 // pred_region
        _
      $region36: #{med_convblock_forward.1} parent=11 // pred_fallthru
        _
      // Predicated region
      $region37: #{med_convblock_forward.1} parent=11 // pred_check
        %p246 = pneg %p187
      $region38: #{med_convblock_forward.1} parent=11 // pred_check_branch
        %248 = sbr.rel (%p246) target = $region40
      $region39: #{med_convblock_forward.1} parent=11 // pred_region
        _
      $region40: #{med_convblock_forward.1} parent=11 // pred_fallthru
        _
    $region12: #{med_convblock_forward.1} parent=5 // pred_fallthru
      _
    %p249 = scmp.lt.s32.totalorder %s14, 2
    // Predicated region
    $region41: #{med_convblock_forward.1} parent=5 // pred_check
      %p250 = pneg %p249
    $region42: #{med_convblock_forward.1} parent=5 // pred_check_branch
      %252 = sbr.rel (%p250) target = $region44
    $region43: #{med_convblock_forward.1} parent=5 // pred_region
      // Predicated region
      $region45: #{med_convblock_forward.1} parent=43 // pred_check
        %p253 = pneg %p34
      $region46: #{med_convblock_forward.1} parent=43 // pred_check_branch
        %255 = sbr.rel (%p253) target = $region48
      $region47: #{med_convblock_forward.1} parent=43 // pred_region
        %p256 = scmp.lt.s32.totalorder %s14, 1
        %s257 = scalar_select %p256, %s14, 1
        %s258 = smul.addr %s257, 16
        %s259 = smul.addr %s258, 8
        %s260 = scalar_lea.vmem %s0, %s259
      $region48: #{med_convblock_forward.1} parent=43 // pred_fallthru
        _
    $region44: #{med_convblock_forward.1} parent=5 // pred_fallthru
      _
    %p261 = scmp.le.s32.totalorder 1, %s14
    %p262 = scmp.lt.s32.totalorder %s14, 3
    %p263 = pnand %p261, %p262
    %p264 = pneg %p263
    // Predicated region
    $region49: #{med_convblock_forward.1} parent=5 // pred_check
      _
    $region50: #{med_convblock_forward.1} parent=5 // pred_check_branch
      %266 = sbr.rel (%p263) target = $region52
    $region51: #{med_convblock_forward.1} parent=5 // pred_region
      %s267 = ssub.s32 %s14, 1
      %p268 = scmp.lt.s32.totalorder %s19, 1
      %s269 = scalar_select %p268, %s19, 1
      %s270 = smul.addr %s269, 16
      %s271 = smul.addr %s270, 8
      %s272 = scalar_lea.vmem %s0, %s271
      %p273 = pneg %p40
      %p274 = pneg %p37
      %p275 = pneg %p61
      %p276 = pneg %p58
      %p277 = pneg %p82
      %p278 = pneg %p79
      %p279 = pneg %p103
      %p280 = pneg %p100
      %p281 = pneg %p124
      %p282 = pneg %p121
      %p283 = pneg %p145
      %p284 = pneg %p142
      %p285 = pneg %p166
      %p286 = pneg %p163
      %p287 = pneg %p187
      %p288 = pneg %p184
      %p289 = pneg %p213
      %p290 = pneg %p210
      %p291 = scmp.lt.s32.totalorder %s19, 1
      %s292 = scalar_select %p291, %s19, 1
      %s293 = smul.addr %s292, 16
      %s294 = smul.addr %s293, 8
      %s295 = scalar_lea.vmem %s8, %s294
      %p296 = scmp.lt.s32.totalorder %s19, 1
      %s297 = scalar_select %p296, %s19, 1
      %s298 = smul.addr %s297, 16
      %s299 = smul.addr %s298, 8
      %s300 = scalar_lea.vmem %s0, %s299
      %p301 = scmp.lt.s32.totalorder %s19, 1
      %s302 = scalar_select %p301, %s19, 1
      %s303 = smul.addr %s302, 16
      %s304 = smul.addr %s303, 8
      %s305 = scalar_lea.vmem %s8, %s304
      %v307 = vld [vmem:[%s300] sm:$0xff]
      %v308 = vld [vmem:[%s300 + $0x8] sm:$0xff]
      %v309 = vld [vmem:[%s300 + $0x10] sm:$0xff]
      %v310 = vld [vmem:[%s300 + $0x18] sm:$0xff]
      %v311 = vld [vmem:[%s300 + $0x20] sm:$0xff]
      %v312 = vld [vmem:[%s300 + $0x28] sm:$0xff]
      %v313 = vld [vmem:[%s300 + $0x30] sm:$0xff]
      %v314 = vld [vmem:[%s300 + $0x38] sm:$0xff]
      %v315 = vld [vmem:[%s300 + $0x40] sm:$0xff]
      %v316 = vld [vmem:[%s300 + $0x48] sm:$0xff]
      %v317 = vld [vmem:[%s300 + $0x50] sm:$0xff]
      %v318 = vld [vmem:[%s300 + $0x58] sm:$0xff]
      %v319 = vld [vmem:[%s300 + $0x60] sm:$0xff]
      %v320 = vld [vmem:[%s300 + $0x68] sm:$0xff]
      %v321 = vld [vmem:[%s300 + $0x70] sm:$0xff]
      %v322 = vld [vmem:[%s300 + $0x78] sm:$0xff]
      %v323 = vpack.c.bf16 %v309, %v307
      %v324 = vpack.c.bf16 %v310, %v308
      %v325 = vpack.c.bf16 %v313, %v311
      %v326 = vpack.c.bf16 %v314, %v312
      %v327 = vpack.c.bf16 %v317, %v315
      %v328 = vpack.c.bf16 %v318, %v316
      %v329 = vpack.c.bf16 %v321, %v319
      %v330 = vpack.c.bf16 %v322, %v320
      %v331 = vld [vmem:[%s1] sm:$0xf]
      %v332 = vld [vmem:[%s1 + $0x4] sm:$0xf]
      %v333 = vld [vmem:[%s2] sm:$0xff]
      %v334 = vld [vmem:[%s2 + $0x8] sm:$0xff]
      %336 = vset.pattern.permute.xlu0 0
      %337 = vperm.xlu0 %336, %v333
      %v338 = vpop.permute.xlu0 %337
      %341 = vset.pattern.permute.xlu0 0
      %342 = vperm.xlu0 %341, %v334
      %v343 = vpop.permute.xlu0 %342
      %v347 = vunpack.c.l.b16 %v331
      %v348 = vunpack.c.l.b16 %v332
      %v349 = vpack.c.b16 %v348, %v347
      %vm350 = vcmask 523264
      %v352 = vsel %vm350, %v349, 0
      %354 = vmatprep.subr.bf16.mxu0 0
      %355 = vmatpush1.bf16.msra.mxu0 0
      %356 = vmatprep.subr.bf16.mxu0 0
      %357 = vmatpush1.bf16.msra.mxu0 0
      %358 = vmatprep.subr.bf16.mxu0 0
      %359 = vmatpush1.bf16.msra.mxu0 0
      %360 = vmatprep.subr.bf16.mxu0 0
      %361 = vmatpush1.bf16.msra.mxu0 0
      %362 = vmatprep.subr.bf16.mxu0 %v330
      %363 = vmatpush1.bf16.msra.mxu0 %v329
      %364 = vmatprep.subr.bf16.mxu0 %v328
      %365 = vmatpush1.bf16.msra.mxu0 %v327
      %366 = vmatprep.subr.bf16.mxu0 %v326
      %367 = vmatpush1.bf16.msra.mxu0 %v325
      %368 = vmatprep.subr.bf16.mxu0 %v324
      %369 = vmatpush1.bf16.msra.mxu0 %v323
      %370 = vmatprep.subr.bf16.mxu0 0
      %371 = vmatpush2.bf16.msra.mxu0 0
      %372 = vmatprep.subr.bf16.mxu0 0
      %373 = vmatpush2.bf16.msra.mxu0 0
      %374 = vmatprep.subr.bf16.mxu0 0
      %375 = vmatpush2.bf16.msra.mxu0 0
      %376 = vmatprep.subr.bf16.mxu0 0
      %377 = vmatpush2.bf16.msra.mxu0 0
      %378 = vmatprep.subr.bf16.mxu0 0
      %379 = vmatpush2.bf16.msra.mxu0 0
      %380 = vmatprep.subr.bf16.mxu0 0
      %381 = vmatpush2.bf16.msra.mxu0 0
      %382 = vmatprep.subr.bf16.mxu0 0
      %383 = vmatpush2.bf16.msra.mxu0 0
      %384 = vmatprep.subr.bf16.mxu0 0
      %385 = vmatpush2.bf16.msra.mxu0 0
      %386 = vmatprep.mubr.bf16.mxu0 0
      %387 = vmatmul.mubr.bf16.gmra.mxu0 %v352
      %v388 = vpop.f32.mrf.mxu0
      %v389 = vadd.f32 %v338, %v388
      %v390 = vpop.f32.mrf.mxu0
      %v391 = vadd.f32 %v338, %v390
      %v392 = vpop.f32.mrf.mxu0
      %v393 = vadd.f32 %v343, %v392
      %v394 = vpop.f32.mrf.mxu0
      %v395 = vadd.f32 %v343, %v394
      %396 = vdwg.mxu0
      %v397 = vmax.f32 %v389, 0.0
      %v398 = vmax.f32 %v391, 0.0
      %v399 = vmax.f32 %v393, 0.0
      %v400 = vmax.f32 %v395, 0.0
      %401 = vrot.lane.b32.xlu0 %v397, 17
      %v402 = vpop.permute.xlu0 %401
      %403 = vrot.lane.b32.xlu0 %v399, 17
      %v404 = vpop.permute.xlu0 %403
      %405 = vrot.lane.b32.xlu0 %v398, 17
      %v406 = vpop.permute.xlu0 %405
      %407 = vrot.lane.b32.xlu0 %v400, 17
      %v408 = vpop.permute.xlu0 %407
      %v409 = vlaneseq
      %v410 = vand.u32 %v409, 127
      %vm411 = vcmp.lt.s32.totalorder %v410, 17
      %v412 = vsel %vm411, %v402, %v406
      %v413 = vsel %vm411, %v404, %v408
      %v414 = vsel %vm411, %v406, %v402
      %v415 = vsel %vm411, %v408, %v404
      %v416 = vld [vmem:[%s7] sm:$0x3]
      %v418 = vlaneseq
      %v419 = vshrl.u32 %v418, 7
      %v420 = vsub.s32 0, %v419
      %v421 = vrot.slane %v416, %v420
      %v422 = vlaneseq
      %v423 = vshrl.u32 %v422, 7
      %v424 = vsub.s32 1, %v423
      %v425 = vrot.slane %v416, %v424
      %v428 = vmul.f32 %v414, %v421
      %v429 = vmul.f32 %v412, %v425
      %v430 = vmul.f32 %v415, %v421
      %v431 = vmul.f32 %v413, %v425
      %v432 = vpack.c.bf16 %v430, %v428
      %v433 = vpack.c.bf16 %v431, %v429
      %434 = vrot.lane.b32.xlu0 %v397, 16
      %v435 = vpop.permute.xlu0 %434
      %436 = vrot.lane.b32.xlu0 %v399, 16
      %v437 = vpop.permute.xlu0 %436
      %438 = vrot.lane.b32.xlu0 %v398, 16
      %v439 = vpop.permute.xlu0 %438
      %440 = vrot.lane.b32.xlu0 %v400, 16
      %v441 = vpop.permute.xlu0 %440
      %vm442 = vcmp.lt.s32.totalorder %v410, 16
      %v443 = vsel %vm442, %v435, %v439
      %v444 = vsel %vm442, %v437, %v441
      %v445 = vsel %vm442, %v439, %v435
      %v446 = vsel %vm442, %v441, %v437
      %s447 = scalar_lea.vmem %s7, 2
      %v448 = vld [vmem:[%s447] sm:$0x3]
      %v450 = vlaneseq
      %v451 = vshrl.u32 %v450, 7
      %v452 = vsub.s32 0, %v451
      %v453 = vrot.slane %v448, %v452
      %v454 = vlaneseq
      %v455 = vshrl.u32 %v454, 7
      %v456 = vsub.s32 1, %v455
      %v457 = vrot.slane %v448, %v456
      %v460 = vmul.f32 %v445, %v453
      %v461 = vmul.f32 %v443, %v457
      %v462 = vmul.f32 %v446, %v453
      %v463 = vmul.f32 %v444, %v457
      %v464 = vpack.c.bf16 %v462, %v460
      %v465 = vpack.c.bf16 %v463, %v461
      %466 = vrot.lane.b32.xlu0 %v397, 15
      %v467 = vpop.permute.xlu0 %466
      %468 = vrot.lane.b32.xlu0 %v399, 15
      %v469 = vpop.permute.xlu0 %468
      %470 = vrot.lane.b32.xlu0 %v398, 15
      %v471 = vpop.permute.xlu0 %470
      %472 = vrot.lane.b32.xlu0 %v400, 15
      %v473 = vpop.permute.xlu0 %472
      %vm474 = vcmp.lt.s32.totalorder %v410, 15
      %v475 = vsel %vm474, %v467, %v471
      %v476 = vsel %vm474, %v469, %v473
      %v477 = vsel %vm474, %v471, %v467
      %v478 = vsel %vm474, %v473, %v469
      %s479 = scalar_lea.vmem %s7, 4
      %v480 = vld [vmem:[%s479] sm:$0x3]
      %v482 = vlaneseq
      %v483 = vshrl.u32 %v482, 7
      %v484 = vsub.s32 0, %v483
      %v485 = vrot.slane %v480, %v484
      %v486 = vlaneseq
      %v487 = vshrl.u32 %v486, 7
      %v488 = vsub.s32 1, %v487
      %v489 = vrot.slane %v480, %v488
      %v492 = vmul.f32 %v477, %v485
      %v493 = vmul.f32 %v475, %v489
      %v494 = vmul.f32 %v478, %v485
      %v495 = vmul.f32 %v476, %v489
      %v496 = vpack.c.bf16 %v494, %v492
      %v497 = vpack.c.bf16 %v495, %v493
      %498 = vrot.lane.b32.xlu0 %v397, 1
      %v499 = vpop.permute.xlu0 %498
      %500 = vrot.lane.b32.xlu0 %v399, 1
      %v501 = vpop.permute.xlu0 %500
      %502 = vrot.lane.b32.xlu0 %v398, 1
      %v503 = vpop.permute.xlu0 %502
      %504 = vrot.lane.b32.xlu0 %v400, 1
      %v505 = vpop.permute.xlu0 %504
      %vm506 = vcmp.lt.s32.totalorder %v410, 1
      %v507 = vsel %vm506, %v499, %v503
      %v508 = vsel %vm506, %v501, %v505
      %v509 = vsel %vm506, %v503, %v499
      %v510 = vsel %vm506, %v505, %v501
      %s511 = scalar_lea.vmem %s7, 6
      %v512 = vld [vmem:[%s511] sm:$0x3]
      %v514 = vlaneseq
      %v515 = vshrl.u32 %v514, 7
      %v516 = vsub.s32 0, %v515
      %v517 = vrot.slane %v512, %v516
      %v518 = vlaneseq
      %v519 = vshrl.u32 %v518, 7
      %v520 = vsub.s32 1, %v519
      %v521 = vrot.slane %v512, %v520
      %v524 = vmul.f32 %v509, %v517
      %v525 = vmul.f32 %v507, %v521
      %v526 = vmul.f32 %v510, %v517
      %v527 = vmul.f32 %v508, %v521
      %v528 = vpack.c.bf16 %v526, %v524
      %v529 = vpack.c.bf16 %v527, %v525
      %v530 = vpack.c.bf16 %v399, %v397
      %v531 = vpack.c.bf16 %v400, %v398
      %532 = vrot.lane.b32.xlu0 %v397, 127
      %v533 = vpop.permute.xlu0 %532
      %534 = vrot.lane.b32.xlu0 %v399, 127
      %v535 = vpop.permute.xlu0 %534
      %536 = vrot.lane.b32.xlu0 %v398, 127
      %v537 = vpop.permute.xlu0 %536
      %538 = vrot.lane.b32.xlu0 %v400, 127
      %v539 = vpop.permute.xlu0 %538
      %vm540 = vcmp.lt.s32.totalorder %v410, 127
      %v541 = vsel %vm540, %v533, %v537
      %v542 = vsel %vm540, %v535, %v539
      %v543 = vsel %vm540, %v537, %v533
      %v544 = vsel %vm540, %v539, %v535
      %s545 = scalar_lea.vmem %s7, 10
      %v546 = vld [vmem:[%s545] sm:$0x3]
      %v548 = vlaneseq
      %v549 = vshrl.u32 %v548, 7
      %v550 = vsub.s32 0, %v549
      %v551 = vrot.slane %v546, %v550
      %v552 = vlaneseq
      %v553 = vshrl.u32 %v552, 7
      %v554 = vsub.s32 1, %v553
      %v555 = vrot.slane %v546, %v554
      %v558 = vmul.f32 %v541, %v551
      %v559 = vmul.f32 %v543, %v555
      %v560 = vmul.f32 %v542, %v551
      %v561 = vmul.f32 %v544, %v555
      %v562 = vpack.c.bf16 %v560, %v558
      %v563 = vpack.c.bf16 %v561, %v559
      %564 = vrot.lane.b32.xlu0 %v397, 113
      %v565 = vpop.permute.xlu0 %564
      %566 = vrot.lane.b32.xlu0 %v399, 113
      %v567 = vpop.permute.xlu0 %566
      %568 = vrot.lane.b32.xlu0 %v398, 113
      %v569 = vpop.permute.xlu0 %568
      %570 = vrot.lane.b32.xlu0 %v400, 113
      %v571 = vpop.permute.xlu0 %570
      %vm572 = vcmp.lt.s32.totalorder %v410, 113
      %v573 = vsel %vm572, %v565, %v569
      %v574 = vsel %vm572, %v567, %v571
      %v575 = vsel %vm572, %v569, %v565
      %v576 = vsel %vm572, %v571, %v567
      %s577 = scalar_lea.vmem %s7, 12
      %v578 = vld [vmem:[%s577] sm:$0x3]
      %v580 = vlaneseq
      %v581 = vshrl.u32 %v580, 7
      %v582 = vsub.s32 0, %v581
      %v583 = vrot.slane %v578, %v582
      %v584 = vlaneseq
      %v585 = vshrl.u32 %v584, 7
      %v586 = vsub.s32 1, %v585
      %v587 = vrot.slane %v578, %v586
      %v590 = vmul.f32 %v573, %v583
      %v591 = vmul.f32 %v575, %v587
      %v592 = vmul.f32 %v574, %v583
      %v593 = vmul.f32 %v576, %v587
      %v594 = vpack.c.bf16 %v592, %v590
      %v595 = vpack.c.bf16 %v593, %v591
      %596 = vrot.lane.b32.xlu0 %v397, 112
      %v597 = vpop.permute.xlu0 %596
      %598 = vrot.lane.b32.xlu0 %v399, 112
      %v599 = vpop.permute.xlu0 %598
      %600 = vrot.lane.b32.xlu0 %v398, 112
      %v601 = vpop.permute.xlu0 %600
      %602 = vrot.lane.b32.xlu0 %v400, 112
      %v603 = vpop.permute.xlu0 %602
      %vm604 = vcmp.lt.s32.totalorder %v410, 112
      %v605 = vsel %vm604, %v597, %v601
      %v606 = vsel %vm604, %v599, %v603
      %v607 = vsel %vm604, %v601, %v597
      %v608 = vsel %vm604, %v603, %v599
      %s609 = scalar_lea.vmem %s7, 14
      %v610 = vld [vmem:[%s609] sm:$0x3]
      %v612 = vlaneseq
      %v613 = vshrl.u32 %v612, 7
      %v614 = vsub.s32 0, %v613
      %v615 = vrot.slane %v610, %v614
      %v616 = vlaneseq
      %v617 = vshrl.u32 %v616, 7
      %v618 = vsub.s32 1, %v617
      %v619 = vrot.slane %v610, %v618
      %v622 = vmul.f32 %v605, %v615
      %v623 = vmul.f32 %v607, %v619
      %v624 = vmul.f32 %v606, %v615
      %v625 = vmul.f32 %v608, %v619
      %v626 = vpack.c.bf16 %v624, %v622
      %v627 = vpack.c.bf16 %v625, %v623
      %628 = vrot.lane.b32.xlu0 %v397, 111
      %v629 = vpop.permute.xlu0 %628
      %630 = vrot.lane.b32.xlu0 %v399, 111
      %v631 = vpop.permute.xlu0 %630
      %632 = vrot.lane.b32.xlu0 %v398, 111
      %v633 = vpop.permute.xlu0 %632
      %634 = vrot.lane.b32.xlu0 %v400, 111
      %v635 = vpop.permute.xlu0 %634
      %vm636 = vcmp.lt.s32.totalorder %v410, 111
      %v637 = vsel %vm636, %v629, %v633
      %v638 = vsel %vm636, %v631, %v635
      %v639 = vsel %vm636, %v633, %v629
      %v640 = vsel %vm636, %v635, %v631
      %s641 = scalar_lea.vmem %s7, 16
      %v642 = vld [vmem:[%s641] sm:$0x3]
      %v644 = vlaneseq
      %v645 = vshrl.u32 %v644, 7
      %v646 = vsub.s32 0, %v645
      %v647 = vrot.slane %v642, %v646
      %v648 = vlaneseq
      %v649 = vshrl.u32 %v648, 7
      %v650 = vsub.s32 1, %v649
      %v651 = vrot.slane %v642, %v650
      %v654 = vmul.f32 %v637, %v647
      %v655 = vmul.f32 %v639, %v651
      %v656 = vmul.f32 %v638, %v647
      %v657 = vmul.f32 %v640, %v651
      %v658 = vpack.c.bf16 %v656, %v654
      %v659 = vpack.c.bf16 %v657, %v655
      %v660 = vld [vmem:[%s3] sm:$0xff]
      %v661 = vld [vmem:[%s3 + $0x8] sm:$0xff]
      %v662 = vld [vmem:[%s4] sm:$0xff]
      %v663 = vld [vmem:[%s4 + $0x8] sm:$0xff]
      %665 = vset.pattern.permute.xlu0 0
      %666 = vperm.xlu0 %665, %v662
      %v667 = vpop.permute.xlu0 %666
      %670 = vset.pattern.permute.xlu0 0
      %671 = vperm.xlu0 %670, %v663
      %v672 = vpop.permute.xlu0 %671
      %v676 = vunpack.c.l.b16 %v660
      %v677 = vunpack.c.h.b16 %v660
      %v678 = vunpack.c.l.b16 %v661
      %v679 = vunpack.c.h.b16 %v661
      %v680 = vpack.c.b16 %v678, %v676
      %v681 = vpack.c.b16 %v679, %v677
      %vm683 = vcmask 130048
      %v685 = vsel %vm683, %v681, 0
      %687 = vmatprep.subr.bf16.mxu0 %v627
      %688 = vmatpush1.bf16.msra.mxu0 %v626
      %689 = vmatprep.subr.bf16.mxu0 %v595
      %690 = vmatpush1.bf16.msra.mxu0 %v594
      %691 = vmatprep.subr.bf16.mxu0 %v563
      %692 = vmatpush1.bf16.msra.mxu0 %v562
      %693 = vmatprep.subr.bf16.mxu0 %v531
      %694 = vmatpush1.bf16.msra.mxu0 %v530
      %695 = vmatprep.subr.bf16.mxu0 %v529
      %696 = vmatpush1.bf16.msra.mxu0 %v528
      %697 = vmatprep.subr.bf16.mxu0 %v497
      %698 = vmatpush1.bf16.msra.mxu0 %v496
      %699 = vmatprep.subr.bf16.mxu0 %v465
      %700 = vmatpush1.bf16.msra.mxu0 %v464
      %701 = vmatprep.subr.bf16.mxu0 %v433
      %702 = vmatpush1.bf16.msra.mxu0 %v432
      %703 = vmatprep.subr.bf16.mxu0 0
      %704 = vmatpush2.bf16.msra.mxu0 0
      %705 = vmatprep.subr.bf16.mxu0 0
      %706 = vmatpush2.bf16.msra.mxu0 0
      %707 = vmatprep.subr.bf16.mxu0 0
      %708 = vmatpush2.bf16.msra.mxu0 0
      %709 = vmatprep.subr.bf16.mxu0 0
      %710 = vmatpush2.bf16.msra.mxu0 0
      %711 = vmatprep.subr.bf16.mxu0 0
      %712 = vmatpush2.bf16.msra.mxu0 0
      %713 = vmatprep.subr.bf16.mxu0 0
      %714 = vmatpush2.bf16.msra.mxu0 0
      %715 = vmatprep.subr.bf16.mxu0 0
      %716 = vmatpush2.bf16.msra.mxu0 0
      %717 = vmatprep.subr.bf16.mxu0 %v659
      %718 = vmatpush2.bf16.msra.mxu0 %v658
      %719 = vmatprep.mubr.bf16.mxu0 %v685
      %720 = vmatmul.mubr.bf16.gmra.mxu0 %v680
      %v721 = vpop.f32.mrf.mxu0
      %v722 = vadd.f32 %v667, %v721
      %v723 = vpop.f32.mrf.mxu0
      %v724 = vadd.f32 %v667, %v723
      %v725 = vpop.f32.mrf.mxu0
      %v726 = vadd.f32 %v672, %v725
      %v727 = vpop.f32.mrf.mxu0
      %v728 = vadd.f32 %v672, %v727
      %729 = vdwg.mxu0
      %v730 = vmax.f32 %v722, 0.0
      %v731 = vmax.f32 %v724, 0.0
      %v732 = vmax.f32 %v726, 0.0
      %v733 = vmax.f32 %v728, 0.0
      %v734 = vpack.c.bf16 %v732, %v730
      %v735 = vpack.c.bf16 %v733, %v731
      %v736 = vld [vmem:[%s5] sm:$0xf]
      %v737 = vld [vmem:[%s5 + $0x4] sm:$0xf]
      %v738 = vld [vmem:[%s5 + $0x8] sm:$0xf]
      %v739 = vld [vmem:[%s5 + $0xc] sm:$0xf]
      %v740 = vld [vmem:[%s5 + $0x10] sm:$0xf]
      %v741 = vld [vmem:[%s5 + $0x14] sm:$0xf]
      %v742 = vld [vmem:[%s5 + $0x18] sm:$0xf]
      %v743 = vld [vmem:[%s5 + $0x1c] sm:$0xf]
      %v744 = vld [vmem:[%s6] sm:$0xff]
      %v745 = vld [vmem:[%s6 + $0x8] sm:$0xff]
      %v746 = vld [vmem:[%s6 + $0x10] sm:$0xff]
      %v747 = vld [vmem:[%s6 + $0x18] sm:$0xff]
      %v748 = vld [vmem:[%s6 + $0x20] sm:$0xff]
      %v749 = vld [vmem:[%s6 + $0x28] sm:$0xff]
      %v750 = vld [vmem:[%s6 + $0x30] sm:$0xff]
      %v751 = vld [vmem:[%s6 + $0x38] sm:$0xff]
      %753 = vset.pattern.permute.xlu0 0
      %754 = vperm.xlu0 %753, %v744
      %v755 = vpop.permute.xlu0 %754
      %758 = vset.pattern.permute.xlu0 0
      %759 = vperm.xlu0 %758, %v745
      %v760 = vpop.permute.xlu0 %759
      %763 = vset.pattern.permute.xlu0 0
      %764 = vperm.xlu0 %763, %v746
      %v765 = vpop.permute.xlu0 %764
      %768 = vset.pattern.permute.xlu0 0
      %769 = vperm.xlu0 %768, %v747
      %v770 = vpop.permute.xlu0 %769
      %773 = vset.pattern.permute.xlu0 0
      %774 = vperm.xlu0 %773, %v748
      %v775 = vpop.permute.xlu0 %774
      %778 = vset.pattern.permute.xlu0 0
      %779 = vperm.xlu0 %778, %v749
      %v780 = vpop.permute.xlu0 %779
      %783 = vset.pattern.permute.xlu0 0
      %784 = vperm.xlu0 %783, %v750
      %v785 = vpop.permute.xlu0 %784
      %788 = vset.pattern.permute.xlu0 0
      %789 = vperm.xlu0 %788, %v751
      %v790 = vpop.permute.xlu0 %789
      %v800 = vunpack.c.l.b16 %v736
      %v801 = vunpack.c.l.b16 %v737
      %v802 = vunpack.c.l.b16 %v738
      %v803 = vunpack.c.l.b16 %v739
      %v804 = vunpack.c.l.b16 %v740
      %v805 = vunpack.c.l.b16 %v741
      %v806 = vunpack.c.l.b16 %v742
      %v807 = vunpack.c.l.b16 %v743
      %v808 = vpack.c.b16 %v801, %v800
      %v809 = vpack.c.b16 %v803, %v802
      %v810 = vpack.c.b16 %v805, %v804
      %v811 = vpack.c.b16 %v807, %v806
      %v813 = vsel %vm683, %v808, 0
      %v816 = vsel %vm683, %v809, 0
      %v819 = vsel %vm683, %v810, 0
      %v822 = vsel %vm683, %v811, 0
      %824 = vmatprep.subr.bf16.mxu0 0
      %825 = vmatpush1.bf16.msra.mxu0 0
      %826 = vmatprep.subr.bf16.mxu0 0
      %827 = vmatpush1.bf16.msra.mxu0 0
      %828 = vmatprep.subr.bf16.mxu0 0
      %829 = vmatpush1.bf16.msra.mxu0 0
      %830 = vmatprep.subr.bf16.mxu0 0
      %831 = vmatpush1.bf16.msra.mxu0 0
      %832 = vmatprep.subr.bf16.mxu0 0
      %833 = vmatpush1.bf16.msra.mxu0 0
      %834 = vmatprep.subr.bf16.mxu0 0
      %835 = vmatpush1.bf16.msra.mxu0 0
      %836 = vmatprep.subr.bf16.mxu0 0
      %837 = vmatpush1.bf16.msra.mxu0 0
      %838 = vmatprep.subr.bf16.mxu0 %v735
      %839 = vmatpush1.bf16.msra.mxu0 %v734
      %840 = vmatprep.subr.bf16.mxu0 0
      %841 = vmatpush2.bf16.msra.mxu0 0
      %842 = vmatprep.subr.bf16.mxu0 0
      %843 = vmatpush2.bf16.msra.mxu0 0
      %844 = vmatprep.subr.bf16.mxu0 0
      %845 = vmatpush2.bf16.msra.mxu0 0
      %846 = vmatprep.subr.bf16.mxu0 0
      %847 = vmatpush2.bf16.msra.mxu0 0
      %848 = vmatprep.subr.bf16.mxu0 0
      %849 = vmatpush2.bf16.msra.mxu0 0
      %850 = vmatprep.subr.bf16.mxu0 0
      %851 = vmatpush2.bf16.msra.mxu0 0
      %852 = vmatprep.subr.bf16.mxu0 0
      %853 = vmatpush2.bf16.msra.mxu0 0
      %854 = vmatprep.subr.bf16.mxu0 0
      %855 = vmatpush2.bf16.msra.mxu0 0
      %856 = vmatprep.mubr.bf16.mxu0 0
      %857 = vmatmul.mubr.bf16.gmra.mxu0 %v813
      %v858 = vpop.f32.mrf.mxu0
      %v859 = vadd.f32 %v755, %v858
      %v860 = vpop.f32.mrf.mxu0
      %v861 = vadd.f32 %v755, %v860
      %v862 = vpop.f32.mrf.mxu0
      %v863 = vadd.f32 %v760, %v862
      %v864 = vpop.f32.mrf.mxu0
      %v865 = vadd.f32 %v760, %v864
      %866 = vmatprep.mubr.bf16.mxu0 0
      %867 = vmatmul.mubr.bf16.gmra.mxu0 %v816
      %v868 = vpop.f32.mrf.mxu0
      %v869 = vadd.f32 %v765, %v868
      %v870 = vpop.f32.mrf.mxu0
      %v871 = vadd.f32 %v765, %v870
      %v872 = vpop.f32.mrf.mxu0
      %v873 = vadd.f32 %v770, %v872
      %v874 = vpop.f32.mrf.mxu0
      %v875 = vadd.f32 %v770, %v874
      %876 = vmatprep.mubr.bf16.mxu0 0
      %877 = vmatmul.mubr.bf16.gmra.mxu0 %v819
      %v878 = vpop.f32.mrf.mxu0
      %v879 = vadd.f32 %v775, %v878
      %v880 = vpop.f32.mrf.mxu0
      %v881 = vadd.f32 %v775, %v880
      %v882 = vpop.f32.mrf.mxu0
      %v883 = vadd.f32 %v780, %v882
      %v884 = vpop.f32.mrf.mxu0
      %v885 = vadd.f32 %v780, %v884
      %886 = vmatprep.mubr.bf16.mxu0 0
      %887 = vmatmul.mubr.bf16.gmra.mxu0 %v822
      %v888 = vpop.f32.mrf.mxu0
      %v889 = vadd.f32 %v785, %v888
      %v890 = vpop.f32.mrf.mxu0
      %v891 = vadd.f32 %v785, %v890
      %v892 = vpop.f32.mrf.mxu0
      %v893 = vadd.f32 %v790, %v892
      %v894 = vpop.f32.mrf.mxu0
      %v895 = vadd.f32 %v790, %v894
      %896 = vdwg.mxu0
      %v897 = vadd.f32 %v859, %v307
      %v898 = vadd.f32 %v861, %v308
      %v899 = vadd.f32 %v863, %v309
      %v900 = vadd.f32 %v865, %v310
      %v901 = vadd.f32 %v869, %v311
      %v902 = vadd.f32 %v871, %v312
      %v903 = vadd.f32 %v873, %v313
      %v904 = vadd.f32 %v875, %v314
      %v905 = vadd.f32 %v879, %v315
      %v906 = vadd.f32 %v881, %v316
      %v907 = vadd.f32 %v883, %v317
      %v908 = vadd.f32 %v885, %v318
      %v909 = vadd.f32 %v889, %v319
      %v910 = vadd.f32 %v891, %v320
      %v911 = vadd.f32 %v893, %v321
      %v912 = vadd.f32 %v895, %v322
      %v913 = vmax.f32 %v897, 0.0
      %v914 = vmax.f32 %v898, 0.0
      %v915 = vmax.f32 %v899, 0.0
      %v916 = vmax.f32 %v900, 0.0
      %v917 = vmax.f32 %v901, 0.0
      %v918 = vmax.f32 %v902, 0.0
      %v919 = vmax.f32 %v903, 0.0
      %v920 = vmax.f32 %v904, 0.0
      %v921 = vmax.f32 %v905, 0.0
      %v922 = vmax.f32 %v906, 0.0
      %v923 = vmax.f32 %v907, 0.0
      %v924 = vmax.f32 %v908, 0.0
      %v925 = vmax.f32 %v909, 0.0
      %v926 = vmax.f32 %v910, 0.0
      %v927 = vmax.f32 %v911, 0.0
      %v928 = vmax.f32 %v912, 0.0
      %929 = vst [vmem:[%s305] sm:$0xff] %v913
      %930 = vst [vmem:[%s305 + $0x8] sm:$0xff] %v914
      %931 = vst [vmem:[%s305 + $0x10] sm:$0xff] %v915
      %932 = vst [vmem:[%s305 + $0x18] sm:$0xff] %v916
      %933 = vst [vmem:[%s305 + $0x20] sm:$0xff] %v917
      %934 = vst [vmem:[%s305 + $0x28] sm:$0xff] %v918
      %935 = vst [vmem:[%s305 + $0x30] sm:$0xff] %v919
      %936 = vst [vmem:[%s305 + $0x38] sm:$0xff] %v920
      %937 = vst [vmem:[%s305 + $0x40] sm:$0xff] %v921
      %938 = vst [vmem:[%s305 + $0x48] sm:$0xff] %v922
      %939 = vst [vmem:[%s305 + $0x50] sm:$0xff] %v923
      %940 = vst [vmem:[%s305 + $0x58] sm:$0xff] %v924
      %941 = vst [vmem:[%s305 + $0x60] sm:$0xff] %v925
      %942 = vst [vmem:[%s305 + $0x68] sm:$0xff] %v926
      %943 = vst [vmem:[%s305 + $0x70] sm:$0xff] %v927
      %944 = vst [vmem:[%s305 + $0x78] sm:$0xff] %v928
      %p945 = scmp.lt.s32.totalorder %s19, 1
      %s946 = scalar_select %p945, %s19, 1
      %s947 = smul.addr %s946, 16
      %s948 = smul.addr %s947, 8
      %s949 = scalar_lea.vmem %s8, %s948
      // Predicated region
      $region53: #{med_convblock_forward.1} parent=51 // pred_check
        %p950 = pneg %p210
      $region54: #{med_convblock_forward.1} parent=51 // pred_check_branch
        %952 = sbr.rel (%p950) target = $region56
      $region55: #{med_convblock_forward.1} parent=51 // pred_region
        _
      $region56: #{med_convblock_forward.1} parent=51 // pred_fallthru
        _
    $region52: #{med_convblock_forward.1} parent=5 // pred_fallthru
      _
    %p953 = scmp.le.s32.totalorder 2, %s14
    // Predicated region
    $region57: #{med_convblock_forward.1} parent=5 // pred_check
      %p954 = pneg %p953
    $region58: #{med_convblock_forward.1} parent=5 // pred_check_branch
      %956 = sbr.rel (%p954) target = $region60
    $region59: #{med_convblock_forward.1} parent=5 // pred_region
      %s957 = ssub.s32 %s14, 2
      // Predicated region
      $region61: #{med_convblock_forward.1} parent=59 // pred_check
        %p958 = pneg %p216
      $region62: #{med_convblock_forward.1} parent=59 // pred_check_branch
        %960 = sbr.rel (%p958) target = $region64
      $region63: #{med_convblock_forward.1} parent=59 // pred_region
        %p961 = scmp.lt.s32.totalorder %s20, 1
        %s962 = scalar_select %p961, %s20, 1
        %s963 = smul.addr %s962, 16
        %s964 = smul.addr %s963, 8
        %s965 = scalar_lea.vmem %s8, %s964
      $region64: #{med_convblock_forward.1} parent=59 // pred_fallthru
        _
    $region60: #{med_convblock_forward.1} parent=5 // pred_fallthru
      _
  $region6: #{med_convblock_forward.1} parent=0 // loop_footer
    %s18 = sadd.s32 1, %s14
  $region7: #{med_convblock_forward.1} parent=0 // loop_footer_branch
    %13 = sbr.rel target = $region3
  $region8: #{med_convblock_forward.1} parent=0 // loop_exit
    _

</llo_original>
